<compile_context>
chip_gen: v7x
topology: tpu7x:2x2x1
jax: 0.10.0
libtpu: 0.0.40
codegen_flags: <defaults>
</compile_context>

<pallas_src>
import numpy as np
import jax
import jax.numpy as jnp
from jax.experimental import pallas as pl
from jax.experimental.pallas import tpu as pltpu


def _round_up(x, m):
    return -(-x // m) * m


def _make_kernel(strip_cols, n_strips, use_bf16):
    """Builds the GLFK kernel for a fixed lane-strip width / strip count."""

    def kernel(scal_ref, s_ref, r_ref, x_ref, o_ref):
        # scal_ref : SMEM (6,)  f32 = [k0, k1, k2, b1, a_lin, c0]
        # s_ref    : SMEM (C2,) f32   per-channel |.|-branch scale
        # r_ref    : SMEM (C2,) f32   per-channel offset (b2/w2)
        # x_ref    : VMEM (W, TC)   f32 -- width on sublanes, B*H on lanes
        # o_ref    : VMEM (Wout, TC) f32
        wout = o_ref.shape[0]
        c2 = s_ref.shape[0]

        k0 = scal_ref[0]
        k1 = scal_ref[1]
        k2 = scal_ref[2]
        b1 = scal_ref[3]
        a_lin = scal_ref[4]
        c0 = scal_ref[5]

        def strip(j0):
            # Conv2d(1,1,(1,3)): three sublane-shifted ref reads for this
            # lane strip (keeps vreg pressure low; vld slots have slack).
            x0 = x_ref[pl.ds(0, wout), pl.ds(j0, strip_cols)]
            x1 = x_ref[pl.ds(1, wout), pl.ds(j0, strip_cols)]
            x2 = x_ref[pl.ds(2, wout), pl.ds(j0, strip_cols)]
            y1 = k0 * x0 + k1 * x1 + k2 * x2 + b1          # (Wout, strip_cols)

            # Folded 1x1-conv chain with the PReLU split:
            #   out = tanh(c0 + a_lin*y1 + sum_c s[c]*|y1 + r[c]|)
            acc = c0 + a_lin * y1
            if use_bf16:
                # Optional packed bf16 VALU path (v6e/v7x only, ~1e-3 accuracy).
                y1h = y1.astype(jnp.bfloat16)
                acc_h = jnp.zeros(y1.shape, jnp.bfloat16)
                for c in range(c2):
                    acc_h = acc_h + (s_ref[c].astype(jnp.bfloat16)
                                     * jnp.abs(y1h + r_ref[c].astype(jnp.bfloat16)))
                acc = acc + acc_h.astype(jnp.float32)
            else:
                for c in range(c2):                         # static unroll over C/2
                    acc = acc + s_ref[c] * jnp.abs(y1 + r_ref[c])

            o_ref[:, pl.ds(j0, strip_cols)] = jnp.tanh(acc)

        if n_strips == 1:
            strip(0)
        else:
            # Non-unrolled strip loop bounds y1/acc live ranges (vreg budget).
            @pl.loop(0, n_strips)
            def _(si):
                strip(pl.multiple_of(si * strip_cols, strip_cols))

    return kernel


def glfk_forward(x, params, *, tile_cols=4096, use_bf16=False):
    """x: (B, H, W) float32.  Returns (B, H, W-2) float32."""
    k, b1, w2, b2, alpha, w3, b3, w4, b4 = params
    B, H, W = x.shape
    assert W >= 3, "width must be >= 3 for the (1,3) conv"
    Wout = W - 2
    R = B * H
    f32 = jnp.float32

    # ---- Fold conv3/conv4 and split the PReLU in the wrapper --------------
    w2v = w2[:, 0].astype(f32)
    b2v = b2[:, 0].astype(f32)
    a = alpha[0, 0].astype(f32)
    v = (w4.astype(f32) @ w3.astype(f32))[0]                       # (C2,)
    c_base = (w4.astype(f32) @ b3.astype(f32))[0, 0] + b4[0, 0]

    nz = jnp.abs(w2v) > 1e-20                                      # live channels
    A = jnp.sum(jnp.where(nz, v * w2v, 0.0))
    Bc = jnp.sum(jnp.where(nz, v * b2v, 0.0))
    # channels with w2 == 0 contribute a constant v*prelu(b2); fold into c0.
    zfold = jnp.sum(jnp.where(nz, 0.0, v * jnp.where(b2v > 0, b2v, a * b2v)))
    a_lin = 0.5 * (1.0 + a) * A
    c0 = c_base + 0.5 * (1.0 + a) * Bc + zfold
    s_vec = jnp.where(nz, 0.5 * (1.0 - a) * v * jnp.abs(w2v), 0.0).astype(f32)
    r_vec = jnp.where(nz, b2v / jnp.where(nz, w2v, 1.0), 0.0).astype(f32)

    scal = jnp.stack([k[0, 0], k[0, 1], k[0, 2],
                      b1[0, 0], a_lin, c0]).astype(f32)

    # ---- Tile selection ----------------------------------------------------
    lane = 128
    r128 = _round_up(R, lane)
    tc = max(lane, (int(tile_cols) // lane) * lane)

    # Clamp so double-buffered in+out blocks stay under a conservative budget
    # (safe for v7x's smaller VMEM).
    vmem_budget = 16 * 1024 * 1024
    tc_vmem = max(lane, (vmem_budget // (8 * (W + Wout))) // lane * lane)
    tc = min(tc, tc_vmem)

    # Guarantee >= 2 grid steps when possible so both v7x TensorCores get work.
    if r128 >= 2 * lane:
        tc = min(tc, _round_up((r128 + 1) // 2, lane))
    tc = min(tc, r128)

    # Balance the tile across the grid steps to minimize padding.
    n_steps = -(-r128 // tc)
    tc = _round_up(-(-r128 // n_steps), lane)
    R_pad = tc * n_steps

    # In-kernel lane-strip width: keep y1/acc/temp per strip within ~12 vregs
    # each so the unrolled channel loop never spills.
    rows = -(-Wout // 8)
    sc = 128
    for cand in (512, 256, 128):
        if tc % cand == 0 and rows * (cand // 128) <= 12:
            sc = cand
            break
    n_strips = tc // sc

    # ---- Lane-dense layout: (W, B*H), B*H padded to a multiple of tc -------
    xt = x.astype(f32).reshape(R, W).T                              # (W, R)
    if R_pad != R:
        xt = jnp.pad(xt, ((0, 0), (0, R_pad - R)))

    kernel = _make_kernel(sc, n_strips, use_bf16)

    out_t = pl.pallas_call(
        kernel,
        out_shape=jax.ShapeDtypeStruct((Wout, R_pad), f32),
        grid_spec=pltpu.PrefetchScalarGridSpec(
            num_scalar_prefetch=0,
            grid=(R_pad // tc,),
            in_specs=[
                pl.BlockSpec(memory_space=pltpu.MemorySpace.SMEM),  # scalars
                pl.BlockSpec(memory_space=pltpu.MemorySpace.SMEM),  # s (per chan)
                pl.BlockSpec(memory_space=pltpu.MemorySpace.SMEM),  # r (per chan)
                pl.BlockSpec((W, tc), lambda i: (0, i)),            # x block
            ],
            out_specs=pl.BlockSpec((Wout, tc), lambda i: (0, i)),
        ),
        compiler_params=pltpu.CompilerParams(
            dimension_semantics=("parallel",),
            vmem_limit_bytes=32 * 1024 * 1024),
    )(scal, s_vec, r_vec, xt)

    # Drop padded columns, back to (B*H, Wout), reshape to (B, H, Wout).
    return out_t[:, :R].T.reshape(B, H, Wout)


def init_params(key, enlager=48):
    """Deterministic synthetic parameters matching the torch module's shapes."""
    c2 = enlager // 2
    ks = jax.random.split(key, 8)
    k = jax.random.normal(ks[0], (1, 3), jnp.float32) * 0.5           # Conv2d(1,1,(1,3)).weight
    b1 = jax.random.normal(ks[1], (1, 1), jnp.float32) * 0.1          # its bias
    w2 = jax.random.normal(ks[2], (c2, 1), jnp.float32) * 0.5         # Conv2d(1,c2,(1,1)).weight
    b2 = jax.random.normal(ks[3], (c2, 1), jnp.float32) * 0.1
    alpha = jnp.full((1, 1), 0.25, jnp.float32)                       # PReLU default init
    w3 = jax.random.normal(ks[4], (enlager, c2), jnp.float32) / jnp.sqrt(c2)      # Conv2d(c2,C,(1,1))
    b3 = jax.random.normal(ks[5], (enlager, 1), jnp.float32) * 0.1
    w4 = jax.random.normal(ks[6], (1, enlager), jnp.float32) / jnp.sqrt(enlager)  # Conv2d(C,1,(1,1))
    b4 = jax.random.normal(ks[7], (1, 1), jnp.float32) * 0.1
    return (k, b1, w2, b2, alpha, w3, b3, w4, b4)


def glfk_ref(x, params):
    """Pure-JAX reference of the torch forward pass (unfolded)."""
    k, b1, w2, b2, alpha, w3, b3, w4, b4 = params
    y1 = (x[..., :-2] * k[0, 0] + x[..., 1:-1] * k[0, 1]
          + x[..., 2:] * k[0, 2] + b1[0, 0])                           # (B,H,Wout)
    y2 = y1[..., None] * w2[:, 0] + b2[:, 0]                           # (B,H,Wout,C2)
    p = jnp.where(y2 > 0, y2, alpha[0, 0] * y2)
    y3 = jnp.einsum('bhwc,dc->bhwd', p, w3) + b3[:, 0]                 # (B,H,Wout,C)
    y4 = jnp.einsum('bhwd,d->bhw', y3, w4[0]) + b4[0, 0]               # (B,H,Wout)
    return jnp.tanh(y4)


if __name__ == "__main__":
    key = jax.random.PRNGKey(0)
    enlager = 48

    # Two shapes: a tiny one (single grid step, padded lanes) and one that
    # exercises the multi-step grid and the in-kernel strip loop.
    for (B, H, W) in [(2, 8, 16), (8, 256, 12)]:
        kx, kp, key = jax.random.split(key, 3)
        x = jax.random.normal(kx, (B, H, W), jnp.float32)
        params = init_params(kp, enlager=enlager)

        out = jax.block_until_ready(glfk_forward(x, params))
        ref = glfk_ref(x, params)

        assert out.shape == (B, H, W - 2), out.shape
        np.testing.assert_allclose(np.asarray(out), np.asarray(ref),
                                   rtol=1e-5, atol=1e-5)

    print("KERNEL_OK")
</pallas_src>

<mosaic_0001>
module attributes {stable_mosaic.version = 11 : i64} {
  func.func @kernel(%arg0: i32, %arg1: memref<6xf32, #tpu.memory_space<smem>>, %arg2: memref<24xf32, #tpu.memory_space<smem>>, %arg3: memref<24xf32, #tpu.memory_space<smem>>, %arg4: memref<16x128xf32, #tpu.memory_space<vmem>>, %arg5: memref<14x128xf32, #tpu.memory_space<vmem>>) attributes {dimension_semantics = [#tpu.dimension_semantics<parallel>], iteration_bounds = array<i64: 1>, scalar_prefetch = 0 : i64, scratch_operands = 0 : i64, tpu.core_type = #tpu.core_type<tc>, window_params = [{transform_indices = @transform_0, window_bounds = array<i64: 6>}, {transform_indices = @transform_1, window_bounds = array<i64: 24>}, {transform_indices = @transform_2, window_bounds = array<i64: 24>}, {transform_indices = @transform_3, window_bounds = array<i64: 16, 128>}, {transform_indices = @transform_4, window_bounds = array<i64: 14, 128>}]} {
    %c0 = arith.constant 0 : index
    %0 = memref.load %arg1[%c0] : memref<6xf32, #tpu.memory_space<smem>>
    %c1 = arith.constant 1 : index
    %1 = memref.load %arg1[%c1] : memref<6xf32, #tpu.memory_space<smem>>
    %c2 = arith.constant 2 : index
    %2 = memref.load %arg1[%c2] : memref<6xf32, #tpu.memory_space<smem>>
    %c3 = arith.constant 3 : index
    %3 = memref.load %arg1[%c3] : memref<6xf32, #tpu.memory_space<smem>>
    %c4 = arith.constant 4 : index
    %4 = memref.load %arg1[%c4] : memref<6xf32, #tpu.memory_space<smem>>
    %c5 = arith.constant 5 : index
    %5 = memref.load %arg1[%c5] : memref<6xf32, #tpu.memory_space<smem>>
    %c0_0 = arith.constant 0 : index
    %c0_1 = arith.constant 0 : index
    %6 = vector.load %arg4[%c0_0, %c0_1] : memref<16x128xf32, #tpu.memory_space<vmem>>, vector<14x128xf32>
    %c1_2 = arith.constant 1 : index
    %c0_3 = arith.constant 0 : index
    %7 = vector.load %arg4[%c1_2, %c0_3] : memref<16x128xf32, #tpu.memory_space<vmem>>, vector<14x128xf32>
    %c2_4 = arith.constant 2 : index
    %c0_5 = arith.constant 0 : index
    %8 = vector.load %arg4[%c2_4, %c0_5] : memref<16x128xf32, #tpu.memory_space<vmem>>, vector<14x128xf32>
    %9 = vector.broadcast %0 : f32 to vector<14x128xf32>
    %10 = arith.mulf %9, %6 : vector<14x128xf32>
    %11 = vector.broadcast %1 : f32 to vector<14x128xf32>
    %12 = arith.mulf %11, %7 : vector<14x128xf32>
    %13 = arith.addf %10, %12 : vector<14x128xf32>
    %14 = vector.broadcast %2 : f32 to vector<14x128xf32>
    %15 = arith.mulf %14, %8 : vector<14x128xf32>
    %16 = arith.addf %13, %15 : vector<14x128xf32>
    %17 = vector.broadcast %3 : f32 to vector<14x128xf32>
    %18 = arith.addf %16, %17 : vector<14x128xf32>
    %19 = vector.broadcast %4 : f32 to vector<14x128xf32>
    %20 = arith.mulf %19, %18 : vector<14x128xf32>
    %21 = vector.broadcast %5 : f32 to vector<14x128xf32>
    %22 = arith.addf %21, %20 : vector<14x128xf32>
    %c0_6 = arith.constant 0 : index
    %23 = memref.load %arg2[%c0_6] : memref<24xf32, #tpu.memory_space<smem>>
    %c0_7 = arith.constant 0 : index
    %24 = memref.load %arg3[%c0_7] : memref<24xf32, #tpu.memory_space<smem>>
    %25 = vector.broadcast %24 : f32 to vector<14x128xf32>
    %26 = arith.addf %18, %25 : vector<14x128xf32>
    %27 = math.absf %26 : vector<14x128xf32>
    %28 = vector.broadcast %23 : f32 to vector<14x128xf32>
    %29 = arith.mulf %28, %27 : vector<14x128xf32>
    %30 = arith.addf %22, %29 : vector<14x128xf32>
    %c1_8 = arith.constant 1 : index
    %31 = memref.load %arg2[%c1_8] : memref<24xf32, #tpu.memory_space<smem>>
    %c1_9 = arith.constant 1 : index
    %32 = memref.load %arg3[%c1_9] : memref<24xf32, #tpu.memory_space<smem>>
    %33 = vector.broadcast %32 : f32 to vector<14x128xf32>
    %34 = arith.addf %18, %33 : vector<14x128xf32>
    %35 = math.absf %34 : vector<14x128xf32>
    %36 = vector.broadcast %31 : f32 to vector<14x128xf32>
    %37 = arith.mulf %36, %35 : vector<14x128xf32>
    %38 = arith.addf %30, %37 : vector<14x128xf32>
    %c2_10 = arith.constant 2 : index
    %39 = memref.load %arg2[%c2_10] : memref<24xf32, #tpu.memory_space<smem>>
    %c2_11 = arith.constant 2 : index
    %40 = memref.load %arg3[%c2_11] : memref<24xf32, #tpu.memory_space<smem>>
    %41 = vector.broadcast %40 : f32 to vector<14x128xf32>
    %42 = arith.addf %18, %41 : vector<14x128xf32>
    %43 = math.absf %42 : vector<14x128xf32>
    %44 = vector.broadcast %39 : f32 to vector<14x128xf32>
    %45 = arith.mulf %44, %43 : vector<14x128xf32>
    %46 = arith.addf %38, %45 : vector<14x128xf32>
    %c3_12 = arith.constant 3 : index
    %47 = memref.load %arg2[%c3_12] : memref<24xf32, #tpu.memory_space<smem>>
    %c3_13 = arith.constant 3 : index
    %48 = memref.load %arg3[%c3_13] : memref<24xf32, #tpu.memory_space<smem>>
    %49 = vector.broadcast %48 : f32 to vector<14x128xf32>
    %50 = arith.addf %18, %49 : vector<14x128xf32>
    %51 = math.absf %50 : vector<14x128xf32>
    %52 = vector.broadcast %47 : f32 to vector<14x128xf32>
    %53 = arith.mulf %52, %51 : vector<14x128xf32>
    %54 = arith.addf %46, %53 : vector<14x128xf32>
    %c4_14 = arith.constant 4 : index
    %55 = memref.load %arg2[%c4_14] : memref<24xf32, #tpu.memory_space<smem>>
    %c4_15 = arith.constant 4 : index
    %56 = memref.load %arg3[%c4_15] : memref<24xf32, #tpu.memory_space<smem>>
    %57 = vector.broadcast %56 : f32 to vector<14x128xf32>
    %58 = arith.addf %18, %57 : vector<14x128xf32>
    %59 = math.absf %58 : vector<14x128xf32>
    %60 = vector.broadcast %55 : f32 to vector<14x128xf32>
    %61 = arith.mulf %60, %59 : vector<14x128xf32>
    %62 = arith.addf %54, %61 : vector<14x128xf32>
    %c5_16 = arith.constant 5 : index
    %63 = memref.load %arg2[%c5_16] : memref<24xf32, #tpu.memory_space<smem>>
    %c5_17 = arith.constant 5 : index
    %64 = memref.load %arg3[%c5_17] : memref<24xf32, #tpu.memory_space<smem>>
    %65 = vector.broadcast %64 : f32 to vector<14x128xf32>
    %66 = arith.addf %18, %65 : vector<14x128xf32>
    %67 = math.absf %66 : vector<14x128xf32>
    %68 = vector.broadcast %63 : f32 to vector<14x128xf32>
    %69 = arith.mulf %68, %67 : vector<14x128xf32>
    %70 = arith.addf %62, %69 : vector<14x128xf32>
    %c6 = arith.constant 6 : index
    %71 = memref.load %arg2[%c6] : memref<24xf32, #tpu.memory_space<smem>>
    %c6_18 = arith.constant 6 : index
    %72 = memref.load %arg3[%c6_18] : memref<24xf32, #tpu.memory_space<smem>>
    %73 = vector.broadcast %72 : f32 to vector<14x128xf32>
    %74 = arith.addf %18, %73 : vector<14x128xf32>
    %75 = math.absf %74 : vector<14x128xf32>
    %76 = vector.broadcast %71 : f32 to vector<14x128xf32>
    %77 = arith.mulf %76, %75 : vector<14x128xf32>
    %78 = arith.addf %70, %77 : vector<14x128xf32>
    %c7 = arith.constant 7 : index
    %79 = memref.load %arg2[%c7] : memref<24xf32, #tpu.memory_space<smem>>
    %c7_19 = arith.constant 7 : index
    %80 = memref.load %arg3[%c7_19] : memref<24xf32, #tpu.memory_space<smem>>
    %81 = vector.broadcast %80 : f32 to vector<14x128xf32>
    %82 = arith.addf %18, %81 : vector<14x128xf32>
    %83 = math.absf %82 : vector<14x128xf32>
    %84 = vector.broadcast %79 : f32 to vector<14x128xf32>
    %85 = arith.mulf %84, %83 : vector<14x128xf32>
    %86 = arith.addf %78, %85 : vector<14x128xf32>
    %c8 = arith.constant 8 : index
    %87 = memref.load %arg2[%c8] : memref<24xf32, #tpu.memory_space<smem>>
    %c8_20 = arith.constant 8 : index
    %88 = memref.load %arg3[%c8_20] : memref<24xf32, #tpu.memory_space<smem>>
    %89 = vector.broadcast %88 : f32 to vector<14x128xf32>
    %90 = arith.addf %18, %89 : vector<14x128xf32>
    %91 = math.absf %90 : vector<14x128xf32>
    %92 = vector.broadcast %87 : f32 to vector<14x128xf32>
    %93 = arith.mulf %92, %91 : vector<14x128xf32>
    %94 = arith.addf %86, %93 : vector<14x128xf32>
    %c9 = arith.constant 9 : index
    %95 = memref.load %arg2[%c9] : memref<24xf32, #tpu.memory_space<smem>>
    %c9_21 = arith.constant 9 : index
    %96 = memref.load %arg3[%c9_21] : memref<24xf32, #tpu.memory_space<smem>>
    %97 = vector.broadcast %96 : f32 to vector<14x128xf32>
    %98 = arith.addf %18, %97 : vector<14x128xf32>
    %99 = math.absf %98 : vector<14x128xf32>
    %100 = vector.broadcast %95 : f32 to vector<14x128xf32>
    %101 = arith.mulf %100, %99 : vector<14x128xf32>
    %102 = arith.addf %94, %101 : vector<14x128xf32>
    %c10 = arith.constant 10 : index
    %103 = memref.load %arg2[%c10] : memref<24xf32, #tpu.memory_space<smem>>
    %c10_22 = arith.constant 10 : index
    %104 = memref.load %arg3[%c10_22] : memref<24xf32, #tpu.memory_space<smem>>
    %105 = vector.broadcast %104 : f32 to vector<14x128xf32>
    %106 = arith.addf %18, %105 : vector<14x128xf32>
    %107 = math.absf %106 : vector<14x128xf32>
    %108 = vector.broadcast %103 : f32 to vector<14x128xf32>
    %109 = arith.mulf %108, %107 : vector<14x128xf32>
    %110 = arith.addf %102, %109 : vector<14x128xf32>
    %c11 = arith.constant 11 : index
    %111 = memref.load %arg2[%c11] : memref<24xf32, #tpu.memory_space<smem>>
    %c11_23 = arith.constant 11 : index
    %112 = memref.load %arg3[%c11_23] : memref<24xf32, #tpu.memory_space<smem>>
    %113 = vector.broadcast %112 : f32 to vector<14x128xf32>
    %114 = arith.addf %18, %113 : vector<14x128xf32>
    %115 = math.absf %114 : vector<14x128xf32>
    %116 = vector.broadcast %111 : f32 to vector<14x128xf32>
    %117 = arith.mulf %116, %115 : vector<14x128xf32>
    %118 = arith.addf %110, %117 : vector<14x128xf32>
    %c12 = arith.constant 12 : index
    %119 = memref.load %arg2[%c12] : memref<24xf32, #tpu.memory_space<smem>>
    %c12_24 = arith.constant 12 : index
    %120 = memref.load %arg3[%c12_24] : memref<24xf32, #tpu.memory_space<smem>>
    %121 = vector.broadcast %120 : f32 to vector<14x128xf32>
    %122 = arith.addf %18, %121 : vector<14x128xf32>
    %123 = math.absf %122 : vector<14x128xf32>
    %124 = vector.broadcast %119 : f32 to vector<14x128xf32>
    %125 = arith.mulf %124, %123 : vector<14x128xf32>
    %126 = arith.addf %118, %125 : vector<14x128xf32>
    %c13 = arith.constant 13 : index
    %127 = memref.load %arg2[%c13] : memref<24xf32, #tpu.memory_space<smem>>
    %c13_25 = arith.constant 13 : index
    %128 = memref.load %arg3[%c13_25] : memref<24xf32, #tpu.memory_space<smem>>
    %129 = vector.broadcast %128 : f32 to vector<14x128xf32>
    %130 = arith.addf %18, %129 : vector<14x128xf32>
    %131 = math.absf %130 : vector<14x128xf32>
    %132 = vector.broadcast %127 : f32 to vector<14x128xf32>
    %133 = arith.mulf %132, %131 : vector<14x128xf32>
    %134 = arith.addf %126, %133 : vector<14x128xf32>
    %c14 = arith.constant 14 : index
    %135 = memref.load %arg2[%c14] : memref<24xf32, #tpu.memory_space<smem>>
    %c14_26 = arith.constant 14 : index
    %136 = memref.load %arg3[%c14_26] : memref<24xf32, #tpu.memory_space<smem>>
    %137 = vector.broadcast %136 : f32 to vector<14x128xf32>
    %138 = arith.addf %18, %137 : vector<14x128xf32>
    %139 = math.absf %138 : vector<14x128xf32>
    %140 = vector.broadcast %135 : f32 to vector<14x128xf32>
    %141 = arith.mulf %140, %139 : vector<14x128xf32>
    %142 = arith.addf %134, %141 : vector<14x128xf32>
    %c15 = arith.constant 15 : index
    %143 = memref.load %arg2[%c15] : memref<24xf32, #tpu.memory_space<smem>>
    %c15_27 = arith.constant 15 : index
    %144 = memref.load %arg3[%c15_27] : memref<24xf32, #tpu.memory_space<smem>>
    %145 = vector.broadcast %144 : f32 to vector<14x128xf32>
    %146 = arith.addf %18, %145 : vector<14x128xf32>
    %147 = math.absf %146 : vector<14x128xf32>
    %148 = vector.broadcast %143 : f32 to vector<14x128xf32>
    %149 = arith.mulf %148, %147 : vector<14x128xf32>
    %150 = arith.addf %142, %149 : vector<14x128xf32>
    %c16 = arith.constant 16 : index
    %151 = memref.load %arg2[%c16] : memref<24xf32, #tpu.memory_space<smem>>
    %c16_28 = arith.constant 16 : index
    %152 = memref.load %arg3[%c16_28] : memref<24xf32, #tpu.memory_space<smem>>
    %153 = vector.broadcast %152 : f32 to vector<14x128xf32>
    %154 = arith.addf %18, %153 : vector<14x128xf32>
    %155 = math.absf %154 : vector<14x128xf32>
    %156 = vector.broadcast %151 : f32 to vector<14x128xf32>
    %157 = arith.mulf %156, %155 : vector<14x128xf32>
    %158 = arith.addf %150, %157 : vector<14x128xf32>
    %c17 = arith.constant 17 : index
    %159 = memref.load %arg2[%c17] : memref<24xf32, #tpu.memory_space<smem>>
    %c17_29 = arith.constant 17 : index
    %160 = memref.load %arg3[%c17_29] : memref<24xf32, #tpu.memory_space<smem>>
    %161 = vector.broadcast %160 : f32 to vector<14x128xf32>
    %162 = arith.addf %18, %161 : vector<14x128xf32>
    %163 = math.absf %162 : vector<14x128xf32>
    %164 = vector.broadcast %159 : f32 to vector<14x128xf32>
    %165 = arith.mulf %164, %163 : vector<14x128xf32>
    %166 = arith.addf %158, %165 : vector<14x128xf32>
    %c18 = arith.constant 18 : index
    %167 = memref.load %arg2[%c18] : memref<24xf32, #tpu.memory_space<smem>>
    %c18_30 = arith.constant 18 : index
    %168 = memref.load %arg3[%c18_30] : memref<24xf32, #tpu.memory_space<smem>>
    %169 = vector.broadcast %168 : f32 to vector<14x128xf32>
    %170 = arith.addf %18, %169 : vector<14x128xf32>
    %171 = math.absf %170 : vector<14x128xf32>
    %172 = vector.broadcast %167 : f32 to vector<14x128xf32>
    %173 = arith.mulf %172, %171 : vector<14x128xf32>
    %174 = arith.addf %166, %173 : vector<14x128xf32>
    %c19 = arith.constant 19 : index
    %175 = memref.load %arg2[%c19] : memref<24xf32, #tpu.memory_space<smem>>
    %c19_31 = arith.constant 19 : index
    %176 = memref.load %arg3[%c19_31] : memref<24xf32, #tpu.memory_space<smem>>
    %177 = vector.broadcast %176 : f32 to vector<14x128xf32>
    %178 = arith.addf %18, %177 : vector<14x128xf32>
    %179 = math.absf %178 : vector<14x128xf32>
    %180 = vector.broadcast %175 : f32 to vector<14x128xf32>
    %181 = arith.mulf %180, %179 : vector<14x128xf32>
    %182 = arith.addf %174, %181 : vector<14x128xf32>
    %c20 = arith.constant 20 : index
    %183 = memref.load %arg2[%c20] : memref<24xf32, #tpu.memory_space<smem>>
    %c20_32 = arith.constant 20 : index
    %184 = memref.load %arg3[%c20_32] : memref<24xf32, #tpu.memory_space<smem>>
    %185 = vector.broadcast %184 : f32 to vector<14x128xf32>
    %186 = arith.addf %18, %185 : vector<14x128xf32>
    %187 = math.absf %186 : vector<14x128xf32>
    %188 = vector.broadcast %183 : f32 to vector<14x128xf32>
    %189 = arith.mulf %188, %187 : vector<14x128xf32>
    %190 = arith.addf %182, %189 : vector<14x128xf32>
    %c21 = arith.constant 21 : index
    %191 = memref.load %arg2[%c21] : memref<24xf32, #tpu.memory_space<smem>>
    %c21_33 = arith.constant 21 : index
    %192 = memref.load %arg3[%c21_33] : memref<24xf32, #tpu.memory_space<smem>>
    %193 = vector.broadcast %192 : f32 to vector<14x128xf32>
    %194 = arith.addf %18, %193 : vector<14x128xf32>
    %195 = math.absf %194 : vector<14x128xf32>
    %196 = vector.broadcast %191 : f32 to vector<14x128xf32>
    %197 = arith.mulf %196, %195 : vector<14x128xf32>
    %198 = arith.addf %190, %197 : vector<14x128xf32>
    %c22 = arith.constant 22 : index
    %199 = memref.load %arg2[%c22] : memref<24xf32, #tpu.memory_space<smem>>
    %c22_34 = arith.constant 22 : index
    %200 = memref.load %arg3[%c22_34] : memref<24xf32, #tpu.memory_space<smem>>
    %201 = vector.broadcast %200 : f32 to vector<14x128xf32>
    %202 = arith.addf %18, %201 : vector<14x128xf32>
    %203 = math.absf %202 : vector<14x128xf32>
    %204 = vector.broadcast %199 : f32 to vector<14x128xf32>
    %205 = arith.mulf %204, %203 : vector<14x128xf32>
    %206 = arith.addf %198, %205 : vector<14x128xf32>
    %c23 = arith.constant 23 : index
    %207 = memref.load %arg2[%c23] : memref<24xf32, #tpu.memory_space<smem>>
    %c23_35 = arith.constant 23 : index
    %208 = memref.load %arg3[%c23_35] : memref<24xf32, #tpu.memory_space<smem>>
    %209 = vector.broadcast %208 : f32 to vector<14x128xf32>
    %210 = arith.addf %18, %209 : vector<14x128xf32>
    %211 = math.absf %210 : vector<14x128xf32>
    %212 = vector.broadcast %207 : f32 to vector<14x128xf32>
    %213 = arith.mulf %212, %211 : vector<14x128xf32>
    %214 = arith.addf %206, %213 : vector<14x128xf32>
    %215 = math.tanh %214 : vector<14x128xf32>
    %c0_36 = arith.constant 0 : index
    %c0_37 = arith.constant 0 : index
    %216 = vector.load %arg5[%c0_36, %c0_37] : memref<14x128xf32, #tpu.memory_space<vmem>>, vector<14x128xf32>
    tpu.vector_store %arg5[%c0_36, %c0_37], %215 {strides = array<i32>} : memref<14x128xf32, #tpu.memory_space<vmem>>, vector<14x128xf32>,
    return
  }
  func.func @transform_0(%arg0: i32) -> i32 {
    %c0_i32 = arith.constant 0 : i32
    %c0_i32_0 = arith.constant 0 : i32
    return %c0_i32 : i32
  }
  func.func @transform_1(%arg0: i32) -> i32 {
    %c0_i32 = arith.constant 0 : i32
    %c0_i32_0 = arith.constant 0 : i32
    return %c0_i32 : i32
  }
  func.func @transform_2(%arg0: i32) -> i32 {
    %c0_i32 = arith.constant 0 : i32
    %c0_i32_0 = arith.constant 0 : i32
    return %c0_i32 : i32
  }
  func.func @transform_3(%arg0: i32) -> (i32, i32) {
    %c0_i32 = arith.constant 0 : i32
    %c0_i32_0 = arith.constant 0 : i32
    return %c0_i32, %arg0 : i32, i32
  }
  func.func @transform_4(%arg0: i32) -> (i32, i32) {
    %c0_i32 = arith.constant 0 : i32
    %c0_i32_0 = arith.constant 0 : i32
    return %c0_i32, %arg0 : i32, i32
  }
}

</mosaic_0001>

<llo_original>
// kernel: tpu_custom_call.1
$region0: #{tpu_custom_call.1}
  #allocation0 [shape = 'u32[]', space=smem, size = 0x4, offset = 0x4, fixed_abs, tag = 'smem constant byte address 0x4 - core index']
  #allocation1 [shape = 'u32[144,128]{1,0:T(1,128)}', space=vmem, size = 0x12000, scoped, tag = 'internal scratch']
  %s0 = inlined_call_operand.hbm [shape: f32[6], index: 0, kind: input, shape index: {}]
  %s1 = inlined_call_operand.vmem [shape: f32[24], index: 1, kind: input, shape index: {}]
  %s2 = inlined_call_operand.vmem [shape: f32[24], index: 2, kind: input, shape index: {}]
  %s3 = inlined_call_operand.hbm [shape: f32[16,128], index: 3, kind: input, shape index: {}]
  %s4 = inlined_call_operand.hbm [shape: f32[14,128], index: 4, kind: output, shape index: {}]
  %s5 = sld [smem:[#allocation0]]
  $region42: #{tpu_custom_call.1} parent=0
    _
  %s7 = ssub.s32 1, %s5
  %s8 = scalar_select 0, %s7, %s5
  $region1: #{tpu_custom_call.1} parent=0
    #allocation2 [shape = 'u8[512]{0}', space=smem, size = 0x200, scoped, tag = 'input window, operand 0, single buffered']
    #allocation3 [shape = 's32[1]{0}', space=sflag, size = 0x4, scoped, tag = 'scoped memory for tpu_custom_call.1']
    #allocation4 [shape = 's32[1]{0}', space=sflag, size = 0x4, scoped, tag = 'scoped memory for tpu_custom_call.1']
    #allocation5 [shape = 's32[1]{0}', space=sflag, size = 0x4, scoped, tag = 'scoped memory for tpu_custom_call.1']
    #allocation6 [shape = 's32[1]{0}', space=sflag, size = 0x4, scoped, tag = 'scoped memory for tpu_custom_call.1']
    #allocation7 [shape = 'u8[512]{0}', space=smem, size = 0x200, scoped, tag = 'input window, operand 1, single buffered']
    #allocation8 [shape = 'u8[512]{0}', space=smem, size = 0x200, scoped, tag = 'input window, operand 2, single buffered']
    #allocation9 [shape = 's32[1]{0}', space=sflag, size = 0x4, scoped, tag = 'scoped memory for tpu_custom_call.1']
    #allocation10 [shape = 'u8[8192]{0}', space=vmem, size = 0x2000, scoped, tag = 'input window, operand 3, single buffered']
    #allocation11 [shape = 'u8[8192]{0}', space=vmem, size = 0x2000, scoped, tag = 'output window, operand 0, single buffered']
    %9 = vsyncpa [#allocation5], 0
    %10 = vsyncpa [#allocation6], 0
    %11 = vsyncpa [#allocation9], 0
    %12 = vsyncpa [#allocation3], 0
    %13 = vsyncpa [#allocation4], 0
    // Predicated region
    $region2: #{tpu_custom_call.1} parent=1 // pred_check
      _
    $region3: #{tpu_custom_call.1} parent=1 // pred_check_branch
      %15 = sbr.rel (0) target = $region5
    $region4: #{tpu_custom_call.1} parent=1 // pred_region
      %s17 = ssub.s32 16, 16
      %18 = vsyncadd [#allocation5], %s17
      %21 = dma.hbm_to_smem %s0, 16, [#allocation2], [#allocation5]
    $region5: #{tpu_custom_call.1} parent=1 // pred_fallthru
      _
    // Predicated region
    $region6: #{tpu_custom_call.1} parent=1 // pred_check
      _
    $region7: #{tpu_custom_call.1} parent=1 // pred_check_branch
      %23 = sbr.rel (0) target = $region9
    $region8: #{tpu_custom_call.1} parent=1 // pred_region
      %s25 = ssub.s32 16, 16
      %26 = vsyncadd [#allocation6], %s25
      %s28 = sshll.u32 %s1, 4
      %s29 = int_to_ptr.vmem [resolvable:$true] %s28
      %31 = dma.vmem_to_smem %s29, 16, [#allocation7], [#allocation6]
    $region9: #{tpu_custom_call.1} parent=1 // pred_fallthru
      _
    // Predicated region
    $region10: #{tpu_custom_call.1} parent=1 // pred_check
      _
    $region11: #{tpu_custom_call.1} parent=1 // pred_check_branch
      %33 = sbr.rel (0) target = $region13
    $region12: #{tpu_custom_call.1} parent=1 // pred_region
      %s35 = ssub.s32 16, 16
      %36 = vsyncadd [#allocation9], %s35
      %s38 = sshll.u32 %s2, 4
      %s39 = int_to_ptr.vmem [resolvable:$true] %s38
      %41 = dma.vmem_to_smem %s39, 16, [#allocation8], [#allocation9]
    $region13: #{tpu_custom_call.1} parent=1 // pred_fallthru
      _
    // Predicated region
    $region14: #{tpu_custom_call.1} parent=1 // pred_check
      _
    $region15: #{tpu_custom_call.1} parent=1 // pred_check_branch
      %43 = sbr.rel (0) target = $region17
    $region16: #{tpu_custom_call.1} parent=1 // pred_region
      %s45 = ssub.s32 256, 256
      %46 = vsyncadd [#allocation3], %s45
      %s47 = sshll.u32 [#allocation10], 4
      %s48 = int_to_ptr.vmem [resolvable:$true] %s47
      %53 = dma.hbm_to_vmem [thread:$0]  %s3, 256, %s48, [#allocation3], 128, 128, 8
    $region17: #{tpu_custom_call.1} parent=1 // pred_fallthru
      _
    // Predicated region
    $region18: #{tpu_custom_call.1} parent=1 // pred_check
      _
    $region19: #{tpu_custom_call.1} parent=1 // pred_check_branch
      %55 = sbr.rel (0) target = $region21
    $region20: #{tpu_custom_call.1} parent=1 // pred_region
      %56 = dma.done [#allocation5], 16
    $region21: #{tpu_custom_call.1} parent=1 // pred_fallthru
      _
    // Predicated region
    $region22: #{tpu_custom_call.1} parent=1 // pred_check
      _
    $region23: #{tpu_custom_call.1} parent=1 // pred_check_branch
      %58 = sbr.rel (0) target = $region25
    $region24: #{tpu_custom_call.1} parent=1 // pred_region
      %59 = dma.done [#allocation6], 16
    $region25: #{tpu_custom_call.1} parent=1 // pred_fallthru
      _
    // Predicated region
    $region26: #{tpu_custom_call.1} parent=1 // pred_check
      _
    $region27: #{tpu_custom_call.1} parent=1 // pred_check_branch
      %61 = sbr.rel (0) target = $region29
    $region28: #{tpu_custom_call.1} parent=1 // pred_region
      %62 = dma.done [#allocation9], 16
    $region29: #{tpu_custom_call.1} parent=1 // pred_fallthru
      _
    // Predicated region
    $region30: #{tpu_custom_call.1} parent=1 // pred_check
      _
    $region31: #{tpu_custom_call.1} parent=1 // pred_check_branch
      %64 = sbr.rel (0) target = $region33
    $region32: #{tpu_custom_call.1} parent=1 // pred_region
      %65 = dma.done [#allocation3], 256
    $region33: #{tpu_custom_call.1} parent=1 // pred_fallthru
      _
    %66 = sfence
    %s67 = sld [smem:[#allocation2]]
    %s68 = sld [smem:[#allocation2 + $0x1]]
    %s69 = sld [smem:[#allocation2 + $0x2]]
    %s70 = sld [smem:[#allocation2 + $0x3]]
    %s71 = sld [smem:[#allocation2 + $0x4]]
    %s72 = sld [smem:[#allocation2 + $0x5]]
    %v73 = vld [vmem:[#allocation10] sm:$0xff]
    %v74 = vld [vmem:[#allocation10 + $0x8] sm:$0x3f]
    %v75 = vld [vmem:[#allocation10 + $0x1] sm:$0xff]
    %v76 = vld [vmem:[#allocation10 + $0x9] sm:$0x3f]
    %v77 = vld [vmem:[#allocation10 + $0x2] sm:$0xff]
    %v78 = vld [vmem:[#allocation10 + $0xa] sm:$0x3f]
    %v79 = vstv %s67
    %v80 = vmul.f32 %v79, %v73
    %v81 = vmul.f32 %v79, %v74
    %v82 = vstv %s68
    %v83 = vmul.f32 %v82, %v75
    %v84 = vmul.f32 %v82, %v76
    %v85 = vadd.f32 %v80, %v83
    %v86 = vadd.f32 %v81, %v84
    %v87 = vstv %s69
    %v88 = vmul.f32 %v87, %v77
    %v89 = vmul.f32 %v87, %v78
    %v90 = vadd.f32 %v85, %v88
    %v91 = vadd.f32 %v86, %v89
    %v92 = vstv %s70
    %v93 = vadd.f32 %v90, %v92
    %v94 = vadd.f32 %v91, %v92
    %v95 = vstv %s71
    %v96 = vmul.f32 %v95, %v93
    %v97 = vmul.f32 %v95, %v94
    %v98 = vstv %s72
    %v99 = vadd.f32 %v98, %v96
    %v100 = vadd.f32 %v98, %v97
    %s101 = sld [smem:[#allocation7]]
    %s102 = sld [smem:[#allocation8]]
    %v103 = vstv %s102
    %v104 = vadd.f32 %v93, %v103
    %v105 = vadd.f32 %v94, %v103
    %v106 = vand.u32 2147483647, %v104
    %v107 = vand.u32 2147483647, %v105
    %v108 = vstv %s101
    %v109 = vmul.f32 %v108, %v106
    %v110 = vmul.f32 %v108, %v107
    %v111 = vadd.f32 %v99, %v109
    %v112 = vadd.f32 %v100, %v110
    %s113 = sld [smem:[#allocation7 + $0x1]]
    %s114 = sld [smem:[#allocation8 + $0x1]]
    %v115 = vstv %s114
    %v116 = vadd.f32 %v93, %v115
    %v117 = vadd.f32 %v94, %v115
    %v118 = vand.u32 2147483647, %v116
    %v119 = vand.u32 2147483647, %v117
    %v120 = vstv %s113
    %v121 = vmul.f32 %v120, %v118
    %v122 = vmul.f32 %v120, %v119
    %v123 = vadd.f32 %v111, %v121
    %v124 = vadd.f32 %v112, %v122
    %s125 = sld [smem:[#allocation7 + $0x2]]
    %s126 = sld [smem:[#allocation8 + $0x2]]
    %v127 = vstv %s126
    %v128 = vadd.f32 %v93, %v127
    %v129 = vadd.f32 %v94, %v127
    %v130 = vand.u32 2147483647, %v128
    %v131 = vand.u32 2147483647, %v129
    %v132 = vstv %s125
    %v133 = vmul.f32 %v132, %v130
    %v134 = vmul.f32 %v132, %v131
    %v135 = vadd.f32 %v123, %v133
    %v136 = vadd.f32 %v124, %v134
    %s137 = sld [smem:[#allocation7 + $0x3]]
    %s138 = sld [smem:[#allocation8 + $0x3]]
    %v139 = vstv %s138
    %v140 = vadd.f32 %v93, %v139
    %v141 = vadd.f32 %v94, %v139
    %v142 = vand.u32 2147483647, %v140
    %v143 = vand.u32 2147483647, %v141
    %v144 = vstv %s137
    %v145 = vmul.f32 %v144, %v142
    %v146 = vmul.f32 %v144, %v143
    %v147 = vadd.f32 %v135, %v145
    %v148 = vadd.f32 %v136, %v146
    %s149 = sld [smem:[#allocation7 + $0x4]]
    %s150 = sld [smem:[#allocation8 + $0x4]]
    %v151 = vstv %s150
    %v152 = vadd.f32 %v93, %v151
    %v153 = vadd.f32 %v94, %v151
    %v154 = vand.u32 2147483647, %v152
    %v155 = vand.u32 2147483647, %v153
    %v156 = vstv %s149
    %v157 = vmul.f32 %v156, %v154
    %v158 = vmul.f32 %v156, %v155
    %v159 = vadd.f32 %v147, %v157
    %v160 = vadd.f32 %v148, %v158
    %s161 = sld [smem:[#allocation7 + $0x5]]
    %s162 = sld [smem:[#allocation8 + $0x5]]
    %v163 = vstv %s162
    %v164 = vadd.f32 %v93, %v163
    %v165 = vadd.f32 %v94, %v163
    %v166 = vand.u32 2147483647, %v164
    %v167 = vand.u32 2147483647, %v165
    %v168 = vstv %s161
    %v169 = vmul.f32 %v168, %v166
    %v170 = vmul.f32 %v168, %v167
    %v171 = vadd.f32 %v159, %v169
    %v172 = vadd.f32 %v160, %v170
    %s173 = sld [smem:[#allocation7 + $0x6]]
    %s174 = sld [smem:[#allocation8 + $0x6]]
    %v175 = vstv %s174
    %v176 = vadd.f32 %v93, %v175
    %v177 = vadd.f32 %v94, %v175
    %v178 = vand.u32 2147483647, %v176
    %v179 = vand.u32 2147483647, %v177
    %v180 = vstv %s173
    %v181 = vmul.f32 %v180, %v178
    %v182 = vmul.f32 %v180, %v179
    %v183 = vadd.f32 %v171, %v181
    %v184 = vadd.f32 %v172, %v182
    %s185 = sld [smem:[#allocation7 + $0x7]]
    %s186 = sld [smem:[#allocation8 + $0x7]]
    %v187 = vstv %s186
    %v188 = vadd.f32 %v93, %v187
    %v189 = vadd.f32 %v94, %v187
    %v190 = vand.u32 2147483647, %v188
    %v191 = vand.u32 2147483647, %v189
    %v192 = vstv %s185
    %v193 = vmul.f32 %v192, %v190
    %v194 = vmul.f32 %v192, %v191
    %v195 = vadd.f32 %v183, %v193
    %v196 = vadd.f32 %v184, %v194
    %s197 = sld [smem:[#allocation7 + $0x8]]
    %s198 = sld [smem:[#allocation8 + $0x8]]
    %v199 = vstv %s198
    %v200 = vadd.f32 %v93, %v199
    %v201 = vadd.f32 %v94, %v199
    %v202 = vand.u32 2147483647, %v200
    %v203 = vand.u32 2147483647, %v201
    %v204 = vstv %s197
    %v205 = vmul.f32 %v204, %v202
    %v206 = vmul.f32 %v204, %v203
    %v207 = vadd.f32 %v195, %v205
    %v208 = vadd.f32 %v196, %v206
    %s209 = sld [smem:[#allocation7 + $0x9]]
    %s210 = sld [smem:[#allocation8 + $0x9]]
    %v211 = vstv %s210
    %v212 = vadd.f32 %v93, %v211
    %v213 = vadd.f32 %v94, %v211
    %v214 = vand.u32 2147483647, %v212
    %v215 = vand.u32 2147483647, %v213
    %v216 = vstv %s209
    %v217 = vmul.f32 %v216, %v214
    %v218 = vmul.f32 %v216, %v215
    %v219 = vadd.f32 %v207, %v217
    %v220 = vadd.f32 %v208, %v218
    %s221 = sld [smem:[#allocation7 + $0xa]]
    %s222 = sld [smem:[#allocation8 + $0xa]]
    %v223 = vstv %s222
    %v224 = vadd.f32 %v93, %v223
    %v225 = vadd.f32 %v94, %v223
    %v226 = vand.u32 2147483647, %v224
    %v227 = vand.u32 2147483647, %v225
    %v228 = vstv %s221
    %v229 = vmul.f32 %v228, %v226
    %v230 = vmul.f32 %v228, %v227
    %v231 = vadd.f32 %v219, %v229
    %v232 = vadd.f32 %v220, %v230
    %s233 = sld [smem:[#allocation7 + $0xb]]
    %s234 = sld [smem:[#allocation8 + $0xb]]
    %v235 = vstv %s234
    %v236 = vadd.f32 %v93, %v235
    %v237 = vadd.f32 %v94, %v235
    %v238 = vand.u32 2147483647, %v236
    %v239 = vand.u32 2147483647, %v237
    %v240 = vstv %s233
    %v241 = vmul.f32 %v240, %v238
    %v242 = vmul.f32 %v240, %v239
    %v243 = vadd.f32 %v231, %v241
    %v244 = vadd.f32 %v232, %v242
    %s245 = sld [smem:[#allocation7 + $0xc]]
    %s246 = sld [smem:[#allocation8 + $0xc]]
    %v247 = vstv %s246
    %v248 = vadd.f32 %v93, %v247
    %v249 = vadd.f32 %v94, %v247
    %v250 = vand.u32 2147483647, %v248
    %v251 = vand.u32 2147483647, %v249
    %v252 = vstv %s245
    %v253 = vmul.f32 %v252, %v250
    %v254 = vmul.f32 %v252, %v251
    %v255 = vadd.f32 %v243, %v253
    %v256 = vadd.f32 %v244, %v254
    %s257 = sld [smem:[#allocation7 + $0xd]]
    %s258 = sld [smem:[#allocation8 + $0xd]]
    %v259 = vstv %s258
    %v260 = vadd.f32 %v93, %v259
    %v261 = vadd.f32 %v94, %v259
    %v262 = vand.u32 2147483647, %v260
    %v263 = vand.u32 2147483647, %v261
    %v264 = vstv %s257
    %v265 = vmul.f32 %v264, %v262
    %v266 = vmul.f32 %v264, %v263
    %v267 = vadd.f32 %v255, %v265
    %v268 = vadd.f32 %v256, %v266
    %s269 = sld [smem:[#allocation7 + $0xe]]
    %s270 = sld [smem:[#allocation8 + $0xe]]
    %v271 = vstv %s270
    %v272 = vadd.f32 %v93, %v271
    %v273 = vadd.f32 %v94, %v271
    %v274 = vand.u32 2147483647, %v272
    %v275 = vand.u32 2147483647, %v273
    %v276 = vstv %s269
    %v277 = vmul.f32 %v276, %v274
    %v278 = vmul.f32 %v276, %v275
    %v279 = vadd.f32 %v267, %v277
    %v280 = vadd.f32 %v268, %v278
    %s281 = sld [smem:[#allocation7 + $0xf]]
    %s282 = sld [smem:[#allocation8 + $0xf]]
    %v283 = vstv %s282
    %v284 = vadd.f32 %v93, %v283
    %v285 = vadd.f32 %v94, %v283
    %v286 = vand.u32 2147483647, %v284
    %v287 = vand.u32 2147483647, %v285
    %v288 = vstv %s281
    %v289 = vmul.f32 %v288, %v286
    %v290 = vmul.f32 %v288, %v287
    %v291 = vadd.f32 %v279, %v289
    %v292 = vadd.f32 %v280, %v290
    %s293 = sld [smem:[#allocation7 + $0x10]]
    %s294 = sld [smem:[#allocation8 + $0x10]]
    %v295 = vstv %s294
    %v296 = vadd.f32 %v93, %v295
    %v297 = vadd.f32 %v94, %v295
    %v298 = vand.u32 2147483647, %v296
    %v299 = vand.u32 2147483647, %v297
    %v300 = vstv %s293
    %v301 = vmul.f32 %v300, %v298
    %v302 = vmul.f32 %v300, %v299
    %v303 = vadd.f32 %v291, %v301
    %v304 = vadd.f32 %v292, %v302
    %s305 = sld [smem:[#allocation7 + $0x11]]
    %s306 = sld [smem:[#allocation8 + $0x11]]
    %v307 = vstv %s306
    %v308 = vadd.f32 %v93, %v307
    %v309 = vadd.f32 %v94, %v307
    %v310 = vand.u32 2147483647, %v308
    %v311 = vand.u32 2147483647, %v309
    %v312 = vstv %s305
    %v313 = vmul.f32 %v312, %v310
    %v314 = vmul.f32 %v312, %v311
    %v315 = vadd.f32 %v303, %v313
    %v316 = vadd.f32 %v304, %v314
    %s317 = sld [smem:[#allocation7 + $0x12]]
    %s318 = sld [smem:[#allocation8 + $0x12]]
    %v319 = vstv %s318
    %v320 = vadd.f32 %v93, %v319
    %v321 = vadd.f32 %v94, %v319
    %v322 = vand.u32 2147483647, %v320
    %v323 = vand.u32 2147483647, %v321
    %v324 = vstv %s317
    %v325 = vmul.f32 %v324, %v322
    %v326 = vmul.f32 %v324, %v323
    %v327 = vadd.f32 %v315, %v325
    %v328 = vadd.f32 %v316, %v326
    %s329 = sld [smem:[#allocation7 + $0x13]]
    %s330 = sld [smem:[#allocation8 + $0x13]]
    %v331 = vstv %s330
    %v332 = vadd.f32 %v93, %v331
    %v333 = vadd.f32 %v94, %v331
    %v334 = vand.u32 2147483647, %v332
    %v335 = vand.u32 2147483647, %v333
    %v336 = vstv %s329
    %v337 = vmul.f32 %v336, %v334
    %v338 = vmul.f32 %v336, %v335
    %v339 = vadd.f32 %v327, %v337
    %v340 = vadd.f32 %v328, %v338
    %s341 = sld [smem:[#allocation7 + $0x14]]
    %s342 = sld [smem:[#allocation8 + $0x14]]
    %v343 = vstv %s342
    %v344 = vadd.f32 %v93, %v343
    %v345 = vadd.f32 %v94, %v343
    %v346 = vand.u32 2147483647, %v344
    %v347 = vand.u32 2147483647, %v345
    %v348 = vstv %s341
    %v349 = vmul.f32 %v348, %v346
    %v350 = vmul.f32 %v348, %v347
    %v351 = vadd.f32 %v339, %v349
    %v352 = vadd.f32 %v340, %v350
    %s353 = sld [smem:[#allocation7 + $0x15]]
    %s354 = sld [smem:[#allocation8 + $0x15]]
    %v355 = vstv %s354
    %v356 = vadd.f32 %v93, %v355
    %v357 = vadd.f32 %v94, %v355
    %v358 = vand.u32 2147483647, %v356
    %v359 = vand.u32 2147483647, %v357
    %v360 = vstv %s353
    %v361 = vmul.f32 %v360, %v358
    %v362 = vmul.f32 %v360, %v359
    %v363 = vadd.f32 %v351, %v361
    %v364 = vadd.f32 %v352, %v362
    %s365 = sld [smem:[#allocation7 + $0x16]]
    %s366 = sld [smem:[#allocation8 + $0x16]]
    %v367 = vstv %s366
    %v368 = vadd.f32 %v93, %v367
    %v369 = vadd.f32 %v94, %v367
    %v370 = vand.u32 2147483647, %v368
    %v371 = vand.u32 2147483647, %v369
    %v372 = vstv %s365
    %v373 = vmul.f32 %v372, %v370
    %v374 = vmul.f32 %v372, %v371
    %v375 = vadd.f32 %v363, %v373
    %v376 = vadd.f32 %v364, %v374
    %s377 = sld [smem:[#allocation7 + $0x17]]
    %s378 = sld [smem:[#allocation8 + $0x17]]
    %v379 = vstv %s378
    %v380 = vadd.f32 %v93, %v379
    %v381 = vadd.f32 %v94, %v379
    %v382 = vand.u32 2147483647, %v380
    %v383 = vand.u32 2147483647, %v381
    %v384 = vstv %s377
    %v385 = vmul.f32 %v384, %v382
    %v386 = vmul.f32 %v384, %v383
    %v387 = vadd.f32 %v375, %v385
    %v388 = vadd.f32 %v376, %v386
    %v389 = vtanh.pop %v387
    %v390 = vtanh.pop %v388
    %391 = vst [vmem:[#allocation11] sm:$0xff] %v389
    %392 = vst [vmem:[#allocation11 + $0x8] sm:$0x3f] %v390
    // Predicated region
    $region34: #{tpu_custom_call.1} parent=1 // pred_check
      _
    $region35: #{tpu_custom_call.1} parent=1 // pred_check_branch
      %394 = sbr.rel (0) target = $region37
    $region36: #{tpu_custom_call.1} parent=1 // pred_region
      %s396 = ssub.s32 256, 256
      %397 = vsyncadd [#allocation4], %s396
      %s398 = sshll.u32 [#allocation11], 4
      %s399 = int_to_ptr.vmem [resolvable:$true] %s398
      %404 = dma.vmem_to_hbm [thread:$0]  %s399, 256, %s4, [#allocation4], 128, 128, 8
    $region37: #{tpu_custom_call.1} parent=1 // pred_fallthru
      _
    // Predicated region
    $region38: #{tpu_custom_call.1} parent=1 // pred_check
      _
    $region39: #{tpu_custom_call.1} parent=1 // pred_check_branch
      %406 = sbr.rel (0) target = $region41
    $region40: #{tpu_custom_call.1} parent=1 // pred_region
      %407 = dma.done [#allocation4], 256
    $region41: #{tpu_custom_call.1} parent=1 // pred_fallthru
      _
    %408 = vsyncpa [#allocation3], 1
    %409 = vsyncpa [#allocation4], 1
    %410 = vsyncpa [#allocation5], 1
    %411 = vsyncpa [#allocation6], 1
    %412 = vsyncpa [#allocation9], 1

</llo_original>
